<compile_context>
chip_gen: v6e
topology: v6e:2x2x1
jax: 0.10.0
libtpu: 0.0.40
codegen_flags: <defaults>
</compile_context>

<pallas_src>
import functools
import math

import jax
import jax.numpy as jnp
import numpy as np
from jax import lax
from jax.experimental import pallas as pl
from jax.experimental.pallas import tpu as pltpu


def compute_padding(in_dim, out_dim, kernel_size, stride):
    """Same helper as the PyTorch module."""
    p = max(0, (out_dim - 1) * stride + kernel_size - in_dim)
    pad_left = p // 2
    pad_right = p - pad_left
    return pad_left, pad_right


def _round_up(x, m):
    return -(-x // m) * m


def _default_im2col_depth():
    """MXU contraction depth: 256 on v6e/v7x, 128 on <=v5 generations."""
    try:
        kind = jax.devices()[0].device_kind.lower()
    except Exception:
        return 256
    return 128 if any(t in kind for t in ("v2", "v3", "v4", "v5")) else 256


def _conv_compute(x_ref, w_ref, b_ref, o_ref, *, K, stride, C_in, cipg, copg,
                  groups, lt, im2col_depth, precision):
    """Compute one (C_out, lt) lane-dense NCL output tile.

    x_ref: (stride*C_in, >= lt + halo)  stride-folded window, row = phase*C_in + channel
    w_ref: (C_out, K*cipg)              per-group flat taps, column = k*cipg + in_ch_in_group
    b_ref: (C_out, 1) float32
    o_ref: (C_out, lt)                  NCL output tile, L on the 128-lane axis
    """
    for g in range(groups):
        wg = w_ref[g * copg:(g + 1) * copg, :]
        bg = b_ref[g * copg:(g + 1) * copg, :].astype(jnp.float32)

        if groups == 1 and K <= stride:
            # Taps are contiguous rows of the folded input: single slice,
            # no concat (no K-fold VMEM store/reload).
            cols = x_ref[0:K * C_in, 0:lt]
            acc = jnp.dot(wg, cols, preferred_element_type=jnp.float32,
                          precision=precision)
        else:
            taps = []
            for k in range(K):                       # static unroll, static slices
                r0 = (k % stride) * C_in + g * cipg  # phase block + group channel offset
                c0 = k // stride                     # static column offset in window
                taps.append(x_ref[r0:r0 + cipg, c0:c0 + lt])
            if cipg < im2col_depth:
                # Single im2col dot: contraction depth K*cipg fills the MXU and
                # does one push/pop per tile instead of K.
                cols = jnp.concatenate(taps, axis=0) if K > 1 else taps[0]
                acc = jnp.dot(wg, cols, preferred_element_type=jnp.float32,
                              precision=precision)
            else:
                # Each tap alone already saturates MXU depth: skip the im2col
                # buffer and accumulate per tap instead.
                acc = jnp.dot(wg[:, :cipg], taps[0],
                              preferred_element_type=jnp.float32,
                              precision=precision)
                for k in range(1, K):
                    acc = acc + jnp.dot(wg[:, k * cipg:(k + 1) * cipg], taps[k],
                                        preferred_element_type=jnp.float32,
                                        precision=precision)

        o_ref[g * copg:(g + 1) * copg, :] = (acc + bg).astype(o_ref.dtype)


def _conv1d_anymem_kernel(x_hbm, w_ref, b_ref, o_ref, xwin, sem, *,
                          lt, wt_cols_p, **compute_kw):
    """Long-L fallback: x stays in HBM; DMA one overlapping window per step."""
    n = pl.program_id(0)
    j = pl.program_id(1)
    col0 = pl.multiple_of(j * lt, 128)
    cp = pltpu.make_async_copy(x_hbm.at[n, :, pl.ds(col0, wt_cols_p)],
                               xwin, sem.at[0])
    cp.start()
    cp.wait()
    _conv_compute(xwin, w_ref, b_ref, o_ref, lt=lt, **compute_kw)


def my_conv1d_pad_same(x, weight, bias, *, stride, groups=1, lt_max=2048,
                       compute_dtype=None, precision=None, im2col_depth=None,
                       vmem_budget_bytes=12 * 1024 * 1024):
    """x: (N, C_in, L); weight: (C_out, C_in//groups, K); bias: (C_out,).

    Returns (N, C_out, L_out) -- identical semantics to MyConv1dPadSame.forward.

    precision: defaults to lax.Precision.DEFAULT (fast, single MXU pass).  Pass
      lax.Precision.HIGHEST to match the f32 PyTorch conv closely.
    compute_dtype: optional MXU operand dtype (e.g. jnp.bfloat16); casting both
      activations and weights to bf16 gives ~1e-2 relative error vs f32.
    """
    N, C_in, L = x.shape
    C_out, cipg, K = weight.shape
    s = int(stride)
    assert s >= 1 and K >= 1
    assert C_in % groups == 0 and C_out % groups == 0 and cipg == C_in // groups
    copg = C_out // groups
    compute_dtype = jnp.dtype(compute_dtype) if compute_dtype is not None else x.dtype
    precision = lax.Precision.DEFAULT if precision is None else precision
    if im2col_depth is None:
        im2col_depth = _default_im2col_depth()

    # ---- SAME padding exactly as the PyTorch forward ----
    out_dim = (L + s - 1) // s
    pad_left, pad_right = compute_padding(L, out_dim, K, s)
    L_pad = L + pad_left + pad_right
    assert L_pad >= K
    L_out = (L_pad - K) // s + 1          # actual nn.Conv1d(VALID) output length
    halo = (K - 1) // s                   # extra folded columns a window needs

    in_bytes = jnp.dtype(compute_dtype).itemsize
    out_bytes = jnp.dtype(x.dtype).itemsize

    def vmem_est(lt_):
        use_i2c = cipg < im2col_depth
        return (2 * s * C_in * _round_up(lt_ + halo, 128) * in_bytes   # x window (dbl-buf)
                + 2 * C_out * K * cipg * in_bytes                      # weight (dbl-buf)
                + 2 * C_out * lt_ * out_bytes                          # out tile (dbl-buf)
                + (K * cipg * lt_ * in_bytes if use_i2c else 0)        # im2col concat
                + 2 * copg * lt_ * 4)                                  # f32 acc slack

    # ---- L_out tiling: single whole-row tile when it fits the VMEM budget ----
    single_tile = (L_out <= lt_max) and (vmem_est(L_out) <= vmem_budget_bytes)
    if single_tile:
        lt, n_lt = L_out, 1
        L_cols = L_out + halo
        wt_cols_p = L_cols
    else:
        lt_cap = max(128, (int(lt_max) // 128) * 128)
        lt = max(128, min(lt_cap, _round_up(L_out, 128)))
        while lt > 128 and vmem_est(lt) > vmem_budget_bytes:
            lt -= 128
        n_lt = -(-L_out // lt)
        wt_cols_p = _round_up(lt + halo, 128)        # lane-aligned window width
        L_cols = (n_lt - 1) * lt + wt_cols_p
    L_ext = L_cols * s                               # padded samples before folding

    # ---- pad; fold stride into channels only when s > 1 (s==1 fast path) ----
    pad_r_ext = max(0, L_ext - pad_left - L)
    x_p = jnp.pad(x, ((0, 0), (0, 0), (pad_left, pad_r_ext)))[:, :, :L_ext]
    if s == 1:
        x_fold = x_p                                 # (N, C_in, L_cols), no fold copy
    else:
        x_fold = (x_p.reshape(N, C_in, L_cols, s)
                      .transpose(0, 3, 1, 2)         # (N, s, C_in, L_cols)
                      .reshape(N, s * C_in, L_cols))
    x_fold = x_fold.astype(compute_dtype)

    # ---- weights: per-group flat (C_out, K*cipg); no zero block-diagonal ----
    # column order matches the in-kernel im2col: (k, c) -> k*cipg + c
    w_flat = jnp.transpose(weight, (0, 2, 1)).reshape(C_out, K * cipg).astype(compute_dtype)
    b2 = bias.reshape(C_out, 1).astype(jnp.float32)

    compute_kw = dict(K=K, stride=s, C_in=C_in, cipg=cipg, copg=copg,
                      groups=groups, im2col_depth=im2col_depth, precision=precision)

    cost = pl.CostEstimate(
        flops=int(2 * N * C_out * K * cipg * L_out),
        transcendentals=0,
        bytes_accessed=int(x_fold.size * in_bytes + w_flat.size * in_bytes
                           + N * C_out * L_out * out_bytes))
    vmem_limit = int(min(64 * 2**20, max(32 * 2**20, 2 * vmem_est(lt))))

    if single_tile:
        # Common path: whole L_out row per batch element, fully auto-pipelined,
        # blocks equal the full trailing dims (no 128-alignment / no halo dup),
        # output written directly at (N, C_out, L_out) -- no trailing slice.
        # TODO(synk): when N == 1 on v7x, splitting L into 2 tiles would feed
        # both TensorCores; skipped here to keep the hot path a single dense dot.
        kernel = functools.partial(_conv_compute, lt=lt, **compute_kw)
        return pl.pallas_call(
            kernel,
            out_shape=jax.ShapeDtypeStruct((N, C_out, L_out), x.dtype),
            grid=(N,),
            in_specs=[
                pl.BlockSpec((None, s * C_in, L_cols), lambda n: (n, 0, 0)),
                pl.BlockSpec((C_out, K * cipg), lambda n: (0, 0)),
                pl.BlockSpec((C_out, 1), lambda n: (0, 0)),
            ],
            out_specs=pl.BlockSpec((None, C_out, L_out), lambda n: (n, 0, 0)),
            compiler_params=pltpu.CompilerParams(
                dimension_semantics=("parallel",),
                vmem_limit_bytes=vmem_limit),
            cost_estimate=cost,
        )(x_fold, w_flat, b2)

    # ---- long-L fallback: x stays in HBM, manual window DMA per (n, j) step ----
    kernel = functools.partial(_conv1d_anymem_kernel, lt=lt, wt_cols_p=wt_cols_p,
                               **compute_kw)
    out_full = pl.pallas_call(
        kernel,
        out_shape=jax.ShapeDtypeStruct((N, C_out, n_lt * lt), x.dtype),
        grid=(N, n_lt),
        in_specs=[
            pl.BlockSpec(memory_space=pl.ANY),                   # raw HBM ref
            pl.BlockSpec((C_out, K * cipg), lambda n, j: (0, 0)),
            pl.BlockSpec((C_out, 1), lambda n, j: (0, 0)),
        ],
        out_specs=pl.BlockSpec((None, C_out, lt), lambda n, j: (n, 0, j)),
        scratch_shapes=[
            pltpu.VMEM((s * C_in, wt_cols_p), compute_dtype),
            pltpu.SemaphoreType.DMA((1,)),
        ],
        compiler_params=pltpu.CompilerParams(
            dimension_semantics=("parallel", "parallel"),
            vmem_limit_bytes=vmem_limit),
        cost_estimate=cost,
    )(x_fold, w_flat, b2)
    if n_lt * lt == L_out:
        return out_full
    # Only hit on the long-L fallback; one extra output pass to trim the tail.
    return out_full[:, :, :L_out]


def _reference(x, weight, bias, *, stride, groups=1):
    """Pure-JAX reference mirroring F.pad + nn.Conv1d."""
    N, C_in, L = x.shape
    K = weight.shape[-1]
    out_dim = (L + stride - 1) // stride
    pad_left, pad_right = compute_padding(L, out_dim, K, stride)
    x_pad = jnp.pad(x, ((0, 0), (0, 0), (pad_left, pad_right)))
    y = lax.conv_general_dilated(
        x_pad, weight, window_strides=(stride,), padding="VALID",
        dimension_numbers=("NCH", "OIH", "NCH"),
        feature_group_count=groups, precision=lax.Precision.HIGHEST)
    return y + bias[None, :, None]


if __name__ == "__main__":
    def _run_case(name, *, N, C_in, C_out, K, stride, groups, L,
                  rtol, atol, **kw):
        key = jax.random.PRNGKey(0)
        kx, kwgt, kb = jax.random.split(key, 3)
        fan_in = (C_in // groups) * K
        bound = 1.0 / math.sqrt(fan_in)
        weight = jax.random.uniform(kwgt, (C_out, C_in // groups, K), jnp.float32,
                                    -bound, bound)
        bias = jax.random.uniform(kb, (C_out,), jnp.float32, -bound, bound)
        x = jax.random.normal(kx, (N, C_in, L), jnp.float32)

        out = my_conv1d_pad_same(x, weight, bias, stride=stride, groups=groups, **kw)
        out = jax.block_until_ready(out)
        ref = _reference(x, weight, bias, stride=stride, groups=groups)
        assert out.shape == ref.shape, (name, out.shape, ref.shape)
        np.testing.assert_allclose(np.asarray(out), np.asarray(ref),
                                   rtol=rtol, atol=atol, err_msg=name)

    HI = lax.Precision.HIGHEST

    # toy conv at the suggested small shapes: batch=2, channels=4, spatial=16
    _run_case("toy", N=2, C_in=4, C_out=8, K=3, stride=2, groups=1, L=16,
              precision=HI, rtol=1e-4, atol=1e-4)
    # grouped, strided conv like BasicBlock 2 (per-group loop, no zero blocks)
    _run_case("groups2", N=2, C_in=32, C_out=64, K=7, stride=2, groups=2, L=100,
              precision=HI, rtol=1e-4, atol=1e-4)
    # K <= stride contiguous-slice special case
    _run_case("contig", N=2, C_in=16, C_out=32, K=2, stride=4, groups=1, L=64,
              precision=HI, rtol=1e-4, atol=1e-4)
    # long-L fallback (manual window DMA from HBM) + stride-1 fast path
    _run_case("l_tiled", N=1, C_in=16, C_out=32, K=7, stride=1, groups=1, L=300,
              lt_max=128, precision=HI, rtol=1e-4, atol=1e-4)
    # bf16 MXU operands + forced per-tap accumulate branch, default precision
    _run_case("bf16_pertap", N=2, C_in=128, C_out=128, K=7, stride=1, groups=2, L=64,
              compute_dtype=jnp.bfloat16, im2col_depth=32, rtol=3e-2, atol=3e-2)
    # default fast mode (f32 inputs, Precision.DEFAULT): the recommended config
    _run_case("default_fast", N=2, C_in=32, C_out=32, K=7, stride=2, groups=1, L=128,
              rtol=2e-2, atol=2e-2)

    print("KERNEL_OK")
</pallas_src>

<mosaic_0001>
module attributes {stable_mosaic.version = 11 : i64} {
  func.func @_conv_compute(%arg0: i32, %arg1: memref<1x8x9xf32, #tpu.memory_space<vmem>>, %arg2: memref<8x12xf32, #tpu.memory_space<vmem>>, %arg3: memref<8x1xf32, #tpu.memory_space<vmem>>, %arg4: memref<1x8x8xf32, #tpu.memory_space<vmem>>) attributes {dimension_semantics = [#tpu.dimension_semantics<parallel>], iteration_bounds = array<i64: 2>, scalar_prefetch = 0 : i64, scratch_operands = 0 : i64, tpu.core_type = #tpu.core_type<tc>, window_params = [{transform_indices = @transform_0, window_bounds = array<i64: 1, 8, 9>}, {pipeline_mode = #tpu.pipeline_mode<synchronous>, transform_indices = @transform_1, window_bounds = array<i64: 8, 12>}, {pipeline_mode = #tpu.pipeline_mode<synchronous>, transform_indices = @transform_2, window_bounds = array<i64: 8, 1>}, {transform_indices = @transform_3, window_bounds = array<i64: 1, 8, 8>}]} {
    %c0 = arith.constant 0 : index
    %c0_0 = arith.constant 0 : index
    %0 = vector.load %arg2[%c0, %c0_0] : memref<8x12xf32, #tpu.memory_space<vmem>>, vector<8x12xf32>
    %c0_1 = arith.constant 0 : index
    %c0_2 = arith.constant 0 : index
    %1 = vector.load %arg3[%c0_1, %c0_2] : memref<8x1xf32, #tpu.memory_space<vmem>>, vector<8x1xf32>
    %c0_3 = arith.constant 0 : index
    %c0_4 = arith.constant 0 : index
    %c0_5 = arith.constant 0 : index
    %2 = vector.load %arg1[%c0_3, %c0_4, %c0_5] : memref<1x8x9xf32, #tpu.memory_space<vmem>>, vector<1x4x8xf32>
    %3 = vector.shape_cast %2 : vector<1x4x8xf32> to vector<4x8xf32>
    %c0_6 = arith.constant 0 : index
    %c4 = arith.constant 4 : index
    %c0_7 = arith.constant 0 : index
    %4 = vector.load %arg1[%c0_6, %c4, %c0_7] : memref<1x8x9xf32, #tpu.memory_space<vmem>>, vector<1x4x8xf32>
    %5 = vector.shape_cast %4 : vector<1x4x8xf32> to vector<4x8xf32>
    %c0_8 = arith.constant 0 : index
    %c0_9 = arith.constant 0 : index
    %c1 = arith.constant 1 : index
    %6 = vector.load %arg1[%c0_8, %c0_9, %c1] : memref<1x8x9xf32, #tpu.memory_space<vmem>>, vector<1x4x8xf32>
    %7 = vector.shape_cast %6 : vector<1x4x8xf32> to vector<4x8xf32>
    %8 = tpu.concatenate %3, %5, %7 in 0 : vector<4x8xf32>, vector<4x8xf32>, vector<4x8xf32> -> vector<12x8xf32>
    %cst = arith.constant dense<0.000000e+00> : vector<8x8xf32>
    %9 = tpu.matmul %0, %8, %cst {dimension_numbers = #tpu.dot_dimension_numbers<[1], [0], [0], [1], [0, 0, 1, 1], [], []>, precision = #tpu.contract_precision<fp32>} : vector<8x12xf32>, vector<12x8xf32>, vector<8x8xf32> -> vector<8x8xf32>
    %10 = vector.broadcast %1 : vector<8x1xf32> to vector<8x8xf32>
    %11 = arith.addf %9, %10 : vector<8x8xf32>
    %c0_10 = arith.constant 0 : index
    %c0_11 = arith.constant 0 : index
    %c0_12 = arith.constant 0 : index
    %12 = vector.load %arg4[%c0_10, %c0_11, %c0_12] : memref<1x8x8xf32, #tpu.memory_space<vmem>>, vector<1x8x8xf32>
    %13 = vector.shape_cast %12 : vector<1x8x8xf32> to vector<8x8xf32>
    %14 = vector.shape_cast %11 : vector<8x8xf32> to vector<1x8x8xf32>
    tpu.vector_store %arg4[%c0_10, %c0_11, %c0_12], %14 {strides = array<i32>} : memref<1x8x8xf32, #tpu.memory_space<vmem>>, vector<1x8x8xf32>,
    return
  }
  func.func @transform_0(%arg0: i32) -> (i32, i32, i32) {
    %c0_i32 = arith.constant 0 : i32
    %c0_i32_0 = arith.constant 0 : i32
    %c0_i32_1 = arith.constant 0 : i32
    return %arg0, %c0_i32, %c0_i32_0 : i32, i32, i32
  }
  func.func @transform_1(%arg0: i32) -> (i32, i32) {
    %c0_i32 = arith.constant 0 : i32
    %c0_i32_0 = arith.constant 0 : i32
    %c0_i32_1 = arith.constant 0 : i32
    return %c0_i32, %c0_i32_0 : i32, i32
  }
  func.func @transform_2(%arg0: i32) -> (i32, i32) {
    %c0_i32 = arith.constant 0 : i32
    %c0_i32_0 = arith.constant 0 : i32
    %c0_i32_1 = arith.constant 0 : i32
    return %c0_i32, %c0_i32_0 : i32, i32
  }
  func.func @transform_3(%arg0: i32) -> (i32, i32, i32) {
    %c0_i32 = arith.constant 0 : i32
    %c0_i32_0 = arith.constant 0 : i32
    %c0_i32_1 = arith.constant 0 : i32
    return %arg0, %c0_i32, %c0_i32_0 : i32, i32, i32
  }
}

</mosaic_0001>

<llo_original>
// kernel: tpu_custom_call.1
$region0: #{tpu_custom_call.1}
  #allocation0 [shape = 'u32[]', space=smem, size = 0x4, offset = 0x4, fixed_abs, tag = 'smem constant byte address 0x4 - core index']
  #allocation1 [shape = 'u32[144,128]{1,0:T(1,128)}', space=vmem, size = 0x12000, scoped, tag = 'internal scratch']
  %s0 = inlined_call_operand.hbm [shape: f32[2,8,9], index: 0, kind: input, shape index: {}]
  %s1 = inlined_call_operand.vmem [shape: f32[8,12], index: 1, kind: input, shape index: {}]
  %s2 = inlined_call_operand.vmem [shape: f32[8,1], index: 2, kind: input, shape index: {}]
  %s3 = inlined_call_operand.hbm [shape: f32[2,8,8], index: 3, kind: output, shape index: {}]
  %s4 = sld [smem:[#allocation0]]
  $region49: #{tpu_custom_call.1} parent=0
    _
  %s6 = ssub.s32 1, %s4
  %s7 = scalar_select 0, %s6, %s4
  $region1: #{tpu_custom_call.1} parent=0
    #allocation2 [shape = 'u8[8192]{0}', space=vmem, size = 0x2000, scoped, tag = 'input window, operand 0']
    #allocation3 [shape = 's32[2]{0}', space=sflag, size = 0x8, scoped, tag = 'scoped memory for tpu_custom_call.1']
    #allocation4 [shape = 's32[2]{0}', space=sflag, size = 0x8, scoped, tag = 'scoped memory for tpu_custom_call.1']
    #allocation5 [shape = 'u8[8192]{0}', space=vmem, size = 0x2000, scoped, tag = 'output window, operand 0']
    %8 = vsyncpa [#allocation3], 0
    %s9 = scalar_lea.sflag [#allocation3], 1
    %10 = vsyncpa %s9, 0
    %11 = vsyncpa [#allocation4], 0
    %s12 = scalar_lea.sflag [#allocation4], 1
    %13 = vsyncpa %s12, 0
    loop: start=0, step=1, limit=4
    $region2: #{tpu_custom_call.1} parent=1 // loop_pre_header
      _
    $region3: #{tpu_custom_call.1} parent=1 // loop_header
      %s15 = sphi 0, %s19
      %p16 = scmp.ge.s32.totalorder %s15, 4
      %s25 = sphi 0, %s27
      %s28 = sphi 0, %s25
      %s29 = sphi 0, %s28
      %s45 = sphi 0, %s29
      %s49 = sphi 0, %s49
      %s51 = sphi 0, %s49
      %s52 = sphi 0, %s51
      %s66 = sphi 0, %s52
      %s70 = sphi 0, %s70
      %s72 = sphi 0, %s70
      %s73 = sphi 0, %s72
      %s87 = sphi 0, %s73
      %s93 = sphi 0, %s95
      %s96 = sphi 0, %s93
      %s97 = sphi 0, %s96
      %s113 = sphi 0, %s97
    $region4: #{tpu_custom_call.1} parent=1 // loop_header_branch
      %18 = sbr.rel (%p16) target = $region8
    $region5: #{tpu_custom_call.1} parent=1 // loop_body
      %s20 = ssub.s32 %s15, 1
      %s21 = ssub.s32 %s15, 2
      %s22 = sadd.s32 %s15, 1
      %s23 = ssub.s32 %s15, %s22
      %p24 = scmp.eq.s32.totalorder %s23, 0
      %s26 = sadd.s32 %s25, 1
      %s27 = scalar_select %p24, %s25, %s26
      %p30 = pneg %p24
      %p31 = scmp.eq.s32.totalorder %s15, 1
      %p32 = por %p30, %p31
      %p33 = scmp.ne.s32.totalorder %s25, %s28
      %p34 = scmp.eq.s32.totalorder %s15, 0
      %p35 = por %p33, %p34
      %p36 = scmp.ne.s32.totalorder %s25, %s28
      %p37 = scmp.eq.s32.totalorder %s20, 1
      %p38 = por %p36, %p37
      %p39 = scmp.ne.s32.totalorder %s28, %s29
      %p40 = scmp.eq.s32.totalorder %s20, 0
      %p41 = por %p39, %p40
      %p42 = scmp.ne.s32.totalorder %s28, %s29
      %p43 = scmp.eq.s32.totalorder %s21, 1
      %p44 = por %p42, %p43
      %p46 = scmp.ne.s32.totalorder %s29, %s45
      %p47 = scmp.eq.s32.totalorder %s21, 0
      %p48 = por %p46, %p47
      %s50 = sadd.s32 %s49, 1
      %p53 = scmp.eq.s32.totalorder %s15, 1
      %p54 = scmp.ne.s32.totalorder %s49, %s51
      %p55 = scmp.eq.s32.totalorder %s15, 0
      %p56 = por %p54, %p55
      %p57 = scmp.ne.s32.totalorder %s49, %s51
      %p58 = scmp.eq.s32.totalorder %s20, 1
      %p59 = por %p57, %p58
      %p60 = scmp.ne.s32.totalorder %s51, %s52
      %p61 = scmp.eq.s32.totalorder %s20, 0
      %p62 = por %p60, %p61
      %p63 = scmp.ne.s32.totalorder %s51, %s52
      %p64 = scmp.eq.s32.totalorder %s21, 1
      %p65 = por %p63, %p64
      %p67 = scmp.ne.s32.totalorder %s52, %s66
      %p68 = scmp.eq.s32.totalorder %s21, 0
      %p69 = por %p67, %p68
      %s71 = sadd.s32 %s70, 1
      %p74 = scmp.eq.s32.totalorder %s15, 1
      %p75 = scmp.ne.s32.totalorder %s70, %s72
      %p76 = scmp.eq.s32.totalorder %s15, 0
      %p77 = por %p75, %p76
      %p78 = scmp.ne.s32.totalorder %s70, %s72
      %p79 = scmp.eq.s32.totalorder %s20, 1
      %p80 = por %p78, %p79
      %p81 = scmp.ne.s32.totalorder %s72, %s73
      %p82 = scmp.eq.s32.totalorder %s20, 0
      %p83 = por %p81, %p82
      %p84 = scmp.ne.s32.totalorder %s72, %s73
      %p85 = scmp.eq.s32.totalorder %s21, 1
      %p86 = por %p84, %p85
      %p88 = scmp.ne.s32.totalorder %s73, %s87
      %p89 = scmp.eq.s32.totalorder %s21, 0
      %p90 = por %p88, %p89
      %s91 = ssub.s32 %s15, %s22
      %p92 = scmp.eq.s32.totalorder %s91, 0
      %s94 = sadd.s32 %s93, 1
      %s95 = scalar_select %p92, %s93, %s94
      %p98 = pneg %p92
      %p99 = scmp.eq.s32.totalorder %s15, 1
      %p100 = por %p98, %p99
      %p101 = scmp.ne.s32.totalorder %s93, %s96
      %p102 = scmp.eq.s32.totalorder %s15, 0
      %p103 = por %p101, %p102
      %p104 = scmp.ne.s32.totalorder %s93, %s96
      %p105 = scmp.eq.s32.totalorder %s20, 1
      %p106 = por %p104, %p105
      %p107 = scmp.ne.s32.totalorder %s96, %s97
      %p108 = scmp.eq.s32.totalorder %s20, 0
      %p109 = por %p107, %p108
      %p110 = scmp.ne.s32.totalorder %s96, %s97
      %p111 = scmp.eq.s32.totalorder %s21, 1
      %p112 = por %p110, %p111
      %p114 = scmp.ne.s32.totalorder %s97, %s113
      %p115 = scmp.eq.s32.totalorder %s21, 0
      %p116 = por %p114, %p115
      %p117 = scmp.le.s32.totalorder 1, %s15
      %p118 = scmp.lt.s32.totalorder %s15, 3
      %p119 = pnand %p117, %p118
      %p120 = pneg %p119
      // Predicated region
      $region9: #{tpu_custom_call.1} parent=5 // pred_check
        _
      $region10: #{tpu_custom_call.1} parent=5 // pred_check_branch
        %122 = sbr.rel (%p119) target = $region12
      $region11: #{tpu_custom_call.1} parent=5 // pred_region
        %s123 = ssub.s32 %s15, 1
        // Predicated region
        $region13: #{tpu_custom_call.1} parent=11 // pred_check
          %p124 = pneg %p62
        $region14: #{tpu_custom_call.1} parent=11 // pred_check_branch
          %126 = sbr.rel (%p124) target = $region16
        $region15: #{tpu_custom_call.1} parent=11 // pred_region
          _
        $region16: #{tpu_custom_call.1} parent=11 // pred_fallthru
          _
        // Predicated region
        $region17: #{tpu_custom_call.1} parent=11 // pred_check
          %p127 = pneg %p83
        $region18: #{tpu_custom_call.1} parent=11 // pred_check_branch
          %129 = sbr.rel (%p127) target = $region20
        $region19: #{tpu_custom_call.1} parent=11 // pred_region
          _
        $region20: #{tpu_custom_call.1} parent=11 // pred_fallthru
          _
      $region12: #{tpu_custom_call.1} parent=5 // pred_fallthru
        _
      %p130 = scmp.lt.s32.totalorder %s15, 2
      // Predicated region
      $region21: #{tpu_custom_call.1} parent=5 // pred_check
        %p131 = pneg %p130
      $region22: #{tpu_custom_call.1} parent=5 // pred_check_branch
        %133 = sbr.rel (%p131) target = $region24
      $region23: #{tpu_custom_call.1} parent=5 // pred_region
        // Predicated region
        $region25: #{tpu_custom_call.1} parent=23 // pred_check
          %p134 = pneg %p35
        $region26: #{tpu_custom_call.1} parent=23 // pred_check_branch
          %136 = sbr.rel (%p134) target = $region28
        $region27: #{tpu_custom_call.1} parent=23 // pred_region
          %s137 = sand.u32 %s25, 1
          %s138 = scalar_lea.sflag [#allocation3], %s137
          %s139 = sand.u32 %s25, 1
          %s140 = smul.addr %s139, 8
          %s141 = scalar_lea.vmem [#allocation2], %s140
          %s143 = ssub.s32 128, 128
          %144 = vsyncadd %s138, %s143
          %s145 = smul.addr %s15, 128
          %s146 = scalar_lea.hbm %s0, %s145
          %s148 = sshll.u32 %s141, 4
          %s149 = int_to_ptr.vmem [resolvable:$true] %s148
          %151 = dma.hbm_to_vmem [thread:$0]  %s146, 128, %s149, %s138
        $region28: #{tpu_custom_call.1} parent=23 // pred_fallthru
          _
      $region24: #{tpu_custom_call.1} parent=5 // pred_fallthru
        _
      %p152 = scmp.le.s32.totalorder 1, %s15
      %p153 = scmp.lt.s32.totalorder %s15, 3
      %p154 = pnand %p152, %p153
      %p155 = pneg %p154
      // Predicated region
      $region29: #{tpu_custom_call.1} parent=5 // pred_check
        _
      $region30: #{tpu_custom_call.1} parent=5 // pred_check_branch
        %157 = sbr.rel (%p154) target = $region32
      $region31: #{tpu_custom_call.1} parent=5 // pred_region
        %s158 = ssub.s32 %s15, 1
        %s159 = sand.u32 %s28, 1
        %s160 = scalar_lea.sflag [#allocation3], %s159
        %s161 = sand.u32 %s28, 1
        %s162 = smul.addr %s161, 8
        %s163 = scalar_lea.vmem [#allocation2], %s162
        // Predicated region
        $region33: #{tpu_custom_call.1} parent=31 // pred_check
          %p164 = pneg %p41
        $region34: #{tpu_custom_call.1} parent=31 // pred_check_branch
          %166 = sbr.rel (%p164) target = $region36
        $region35: #{tpu_custom_call.1} parent=31 // pred_region
          %167 = dma.done %s160, 128
        $region36: #{tpu_custom_call.1} parent=31 // pred_fallthru
          _
        %s168 = sand.u32 %s28, 1
        %s169 = scalar_lea.sflag [#allocation3], %s168
        %s170 = sand.u32 %s28, 1
        %s171 = smul.addr %s170, 8
        %s172 = scalar_lea.vmem [#allocation2], %s171
        %p173 = pneg %p41
        %p174 = pneg %p38
        %p175 = pneg %p62
        %p176 = pneg %p59
        %p177 = pneg %p83
        %p178 = pneg %p80
        %p179 = pneg %p109
        %p180 = pneg %p106
        %s181 = sand.u32 %s96, 1
        %s182 = scalar_lea.sflag [#allocation4], %s181
        %s183 = sand.u32 %s96, 1
        %s184 = smul.addr %s183, 8
        %s185 = scalar_lea.vmem [#allocation5], %s184
        %v186 = vld [vmem:[%s1] sm:$0xff]
        %v187 = vld [vmem:[%s2] sm:$0xff]
        %v188 = vld [vmem:[%s163] sm:$0xf]
        %v189 = vld [vmem:[%s163 + $0x4] sm:$0xf]
        %v191 = vrot.slane %v189, 4
        %194 = vrot.lane.b32.xlu0 %v188, 127
        %v195 = vpop.permute.xlu0 %194
        %vm196 = vcmask 1043456
        %v197 = vsel %vm196, %v188, %v191
        %199 = vset.pattern.permute.xlu0 0
        %200 = vperm.xlu0 %199, %v187
        %v201 = vpop.permute.xlu0 %200
        %vm203 = vcmask 97280
        %v205 = vsel %vm203, %v186, 0
        %v207 = vsel %vm196, %v195, 0
        %209 = vmatprep.subr.mxu0 0.0
        %210 = vmatpush1.msra.mxu0 0.0
        %211 = vmatprep.subr.mxu0 0.0
        %212 = vmatpush1.msra.mxu0 0.0
        %213 = vmatprep.subr.mxu0 0.0
        %214 = vmatpush1.msra.mxu0 0.0
        %215 = vmatprep.subr.mxu0 0.0
        %216 = vmatpush1.msra.mxu0 0.0
        %217 = vmatprep.subr.mxu0 0.0
        %218 = vmatpush1.msra.mxu0 0.0
        %219 = vmatprep.subr.mxu0 0.0
        %220 = vmatpush1.msra.mxu0 0.0
        %221 = vmatprep.subr.mxu0 0.0
        %222 = vmatpush1.msra.mxu0 0.0
        %223 = vmatprep.subr.mxu0 0.0
        %224 = vmatpush1.msra.mxu0 0.0
        %225 = vmatprep.subr.mxu0 0.0
        %226 = vmatpush1.msra.mxu0 0.0
        %227 = vmatprep.subr.mxu0 0.0
        %228 = vmatpush1.msra.mxu0 0.0
        %229 = vmatprep.subr.mxu0 0.0
        %230 = vmatpush1.msra.mxu0 0.0
        %231 = vmatprep.subr.mxu0 0.0
        %232 = vmatpush1.msra.mxu0 0.0
        %233 = vmatprep.subr.mxu0 0.0
        %234 = vmatpush1.msra.mxu0 0.0
        %235 = vmatprep.subr.mxu0 0.0
        %236 = vmatpush1.msra.mxu0 0.0
        %237 = vmatprep.subr.mxu0 0.0
        %v238 = vand.u32 %v207, 4294901760
        %239 = vmatpush1.msra.mxu0 %v238
        %240 = vmatprep.subr.mxu0 0.0
        %v241 = vand.u32 %v197, 4294901760
        %242 = vmatpush1.msra.mxu0 %v241
        %243 = vmatprep.subr.mxu0 0.0
        %244 = vmatpush2.msra.mxu0 0.0
        %245 = vmatprep.subr.mxu0 0.0
        %246 = vmatpush2.msra.mxu0 0.0
        %247 = vmatprep.subr.mxu0 0.0
        %248 = vmatpush2.msra.mxu0 0.0
        %249 = vmatprep.subr.mxu0 0.0
        %250 = vmatpush2.msra.mxu0 0.0
        %251 = vmatprep.subr.mxu0 0.0
        %252 = vmatpush2.msra.mxu0 0.0
        %253 = vmatprep.subr.mxu0 0.0
        %254 = vmatpush2.msra.mxu0 0.0
        %255 = vmatprep.subr.mxu0 0.0
        %256 = vmatpush2.msra.mxu0 0.0
        %257 = vmatprep.subr.mxu0 0.0
        %258 = vmatpush2.msra.mxu0 0.0
        %259 = vmatprep.subr.mxu0 0.0
        %260 = vmatpush2.msra.mxu0 0.0
        %261 = vmatprep.subr.mxu0 0.0
        %262 = vmatpush2.msra.mxu0 0.0
        %263 = vmatprep.subr.mxu0 0.0
        %264 = vmatpush2.msra.mxu0 0.0
        %265 = vmatprep.subr.mxu0 0.0
        %266 = vmatpush2.msra.mxu0 0.0
        %267 = vmatprep.subr.mxu0 0.0
        %268 = vmatpush2.msra.mxu0 0.0
        %269 = vmatprep.subr.mxu0 0.0
        %270 = vmatpush2.msra.mxu0 0.0
        %271 = vmatprep.subr.mxu0 0.0
        %272 = vmatpush2.msra.mxu0 0.0
        %273 = vmatprep.subr.mxu0 0.0
        %274 = vmatpush2.msra.mxu0 0.0
        %275 = vmatprep.mubr.f32.mxu0 0.0
        %v276 = vand.u32 %v205, 4294901760
        %v277 = vsub.f32 %v205, %v276
        %v278 = vand.u32 %v277, 4294901760
        %v279 = vsub.f32 %v277, %v278
        %v280 = vand.u32 %v279, 4294901760
        %281 = vmatmul.mubr.f32.gmra.mxu0 %v280
        %v282 = vpop.f32.mrf.mxu0
        %v283 = vadd.f32 %v201, %v282
        %v284 = vpop.f32.mrf.mxu0
        %285 = vdwg.mxu0
        %286 = vmatprep.subr.mxu0 0.0
        %287 = vmatpush1.msra.mxu0 0.0
        %288 = vmatprep.subr.mxu0 0.0
        %289 = vmatpush1.msra.mxu0 0.0
        %290 = vmatprep.subr.mxu0 0.0
        %291 = vmatpush1.msra.mxu0 0.0
        %292 = vmatprep.subr.mxu0 0.0
        %293 = vmatpush1.msra.mxu0 0.0
        %294 = vmatprep.subr.mxu0 0.0
        %295 = vmatpush1.msra.mxu0 0.0
        %296 = vmatprep.subr.mxu0 0.0
        %297 = vmatpush1.msra.mxu0 0.0
        %298 = vmatprep.subr.mxu0 0.0
        %299 = vmatpush1.msra.mxu0 0.0
        %300 = vmatprep.subr.mxu0 0.0
        %301 = vmatpush1.msra.mxu0 0.0
        %302 = vmatprep.subr.mxu0 0.0
        %303 = vmatpush1.msra.mxu0 0.0
        %304 = vmatprep.subr.mxu0 0.0
        %305 = vmatpush1.msra.mxu0 0.0
        %306 = vmatprep.subr.mxu0 0.0
        %307 = vmatpush1.msra.mxu0 0.0
        %308 = vmatprep.subr.mxu0 0.0
        %309 = vmatpush1.msra.mxu0 0.0
        %310 = vmatprep.subr.mxu0 0.0
        %311 = vmatpush1.msra.mxu0 0.0
        %312 = vmatprep.subr.mxu0 0.0
        %313 = vmatpush1.msra.mxu0 0.0
        %314 = vmatprep.subr.mxu0 0.0
        %v315 = vand.u32 %v207, 4294901760
        %v316 = vsub.f32 %v207, %v315
        %v317 = vand.u32 %v316, 4294901760
        %v318 = vsub.f32 %v316, %v317
        %v319 = vand.u32 %v318, 4294901760
        %320 = vmatpush1.msra.mxu0 %v319
        %321 = vmatprep.subr.mxu0 0.0
        %v322 = vand.u32 %v197, 4294901760
        %v323 = vsub.f32 %v197, %v322
        %v324 = vand.u32 %v323, 4294901760
        %v325 = vsub.f32 %v323, %v324
        %v326 = vand.u32 %v325, 4294901760
        %327 = vmatpush1.msra.mxu0 %v326
        %328 = vmatprep.subr.mxu0 0.0
        %329 = vmatpush2.msra.mxu0 0.0
        %330 = vmatprep.subr.mxu0 0.0
        %331 = vmatpush2.msra.mxu0 0.0
        %332 = vmatprep.subr.mxu0 0.0
        %333 = vmatpush2.msra.mxu0 0.0
        %334 = vmatprep.subr.mxu0 0.0
        %335 = vmatpush2.msra.mxu0 0.0
        %336 = vmatprep.subr.mxu0 0.0
        %337 = vmatpush2.msra.mxu0 0.0
        %338 = vmatprep.subr.mxu0 0.0
        %339 = vmatpush2.msra.mxu0 0.0
        %340 = vmatprep.subr.mxu0 0.0
        %341 = vmatpush2.msra.mxu0 0.0
        %342 = vmatprep.subr.mxu0 0.0
        %343 = vmatpush2.msra.mxu0 0.0
        %344 = vmatprep.subr.mxu0 0.0
        %345 = vmatpush2.msra.mxu0 0.0
        %346 = vmatprep.subr.mxu0 0.0
        %347 = vmatpush2.msra.mxu0 0.0
        %348 = vmatprep.subr.mxu0 0.0
        %349 = vmatpush2.msra.mxu0 0.0
        %350 = vmatprep.subr.mxu0 0.0
        %351 = vmatpush2.msra.mxu0 0.0
        %352 = vmatprep.subr.mxu0 0.0
        %353 = vmatpush2.msra.mxu0 0.0
        %354 = vmatprep.subr.mxu0 0.0
        %355 = vmatpush2.msra.mxu0 0.0
        %356 = vmatprep.subr.mxu0 0.0
        %357 = vmatpush2.msra.mxu0 0.0
        %358 = vmatprep.subr.mxu0 0.0
        %359 = vmatpush2.msra.mxu0 0.0
        %360 = vmatprep.mubr.f32.mxu0 0.0
        %v361 = vand.u32 %v205, 4294901760
        %362 = vmatmul.mubr.f32.gmra.mxu0 %v361
        %v363 = vpop.f32.mrf.mxu0
        %v364 = vadd.f32 %v283, %v363
        %v365 = vpop.f32.mrf.mxu0
        %366 = vdwg.mxu0
        %367 = vmatprep.subr.mxu0 0.0
        %368 = vmatpush1.msra.mxu0 0.0
        %369 = vmatprep.subr.mxu0 0.0
        %370 = vmatpush1.msra.mxu0 0.0
        %371 = vmatprep.subr.mxu0 0.0
        %372 = vmatpush1.msra.mxu0 0.0
        %373 = vmatprep.subr.mxu0 0.0
        %374 = vmatpush1.msra.mxu0 0.0
        %375 = vmatprep.subr.mxu0 0.0
        %376 = vmatpush1.msra.mxu0 0.0
        %377 = vmatprep.subr.mxu0 0.0
        %378 = vmatpush1.msra.mxu0 0.0
        %379 = vmatprep.subr.mxu0 0.0
        %380 = vmatpush1.msra.mxu0 0.0
        %381 = vmatprep.subr.mxu0 0.0
        %382 = vmatpush1.msra.mxu0 0.0
        %383 = vmatprep.subr.mxu0 0.0
        %384 = vmatpush1.msra.mxu0 0.0
        %385 = vmatprep.subr.mxu0 0.0
        %386 = vmatpush1.msra.mxu0 0.0
        %387 = vmatprep.subr.mxu0 0.0
        %388 = vmatpush1.msra.mxu0 0.0
        %389 = vmatprep.subr.mxu0 0.0
        %390 = vmatpush1.msra.mxu0 0.0
        %391 = vmatprep.subr.mxu0 0.0
        %392 = vmatpush1.msra.mxu0 0.0
        %393 = vmatprep.subr.mxu0 0.0
        %394 = vmatpush1.msra.mxu0 0.0
        %395 = vmatprep.subr.mxu0 0.0
        %v396 = vand.u32 %v207, 4294901760
        %v397 = vsub.f32 %v207, %v396
        %398 = vmatpush1.msra.mxu0 %v397
        %399 = vmatprep.subr.mxu0 0.0
        %v400 = vand.u32 %v197, 4294901760
        %v401 = vsub.f32 %v197, %v400
        %402 = vmatpush1.msra.mxu0 %v401
        %403 = vmatprep.subr.mxu0 0.0
        %404 = vmatpush2.msra.mxu0 0.0
        %405 = vmatprep.subr.mxu0 0.0
        %406 = vmatpush2.msra.mxu0 0.0
        %407 = vmatprep.subr.mxu0 0.0
        %408 = vmatpush2.msra.mxu0 0.0
        %409 = vmatprep.subr.mxu0 0.0
        %410 = vmatpush2.msra.mxu0 0.0
        %411 = vmatprep.subr.mxu0 0.0
        %412 = vmatpush2.msra.mxu0 0.0
        %413 = vmatprep.subr.mxu0 0.0
        %414 = vmatpush2.msra.mxu0 0.0
        %415 = vmatprep.subr.mxu0 0.0
        %416 = vmatpush2.msra.mxu0 0.0
        %417 = vmatprep.subr.mxu0 0.0
        %418 = vmatpush2.msra.mxu0 0.0
        %419 = vmatprep.subr.mxu0 0.0
        %420 = vmatpush2.msra.mxu0 0.0
        %421 = vmatprep.subr.mxu0 0.0
        %422 = vmatpush2.msra.mxu0 0.0
        %423 = vmatprep.subr.mxu0 0.0
        %424 = vmatpush2.msra.mxu0 0.0
        %425 = vmatprep.subr.mxu0 0.0
        %426 = vmatpush2.msra.mxu0 0.0
        %427 = vmatprep.subr.mxu0 0.0
        %428 = vmatpush2.msra.mxu0 0.0
        %429 = vmatprep.subr.mxu0 0.0
        %430 = vmatpush2.msra.mxu0 0.0
        %431 = vmatprep.subr.mxu0 0.0
        %432 = vmatpush2.msra.mxu0 0.0
        %433 = vmatprep.subr.mxu0 0.0
        %434 = vmatpush2.msra.mxu0 0.0
        %435 = vmatprep.mubr.f32.mxu0 0.0
        %v436 = vand.u32 %v205, 4294901760
        %v437 = vsub.f32 %v205, %v436
        %438 = vmatmul.mubr.f32.gmra.mxu0 %v437
        %v439 = vpop.f32.mrf.mxu0
        %v440 = vadd.f32 %v364, %v439
        %v441 = vpop.f32.mrf.mxu0
        %442 = vdwg.mxu0
        %443 = vmatprep.subr.mxu0 0.0
        %444 = vmatpush1.msra.mxu0 0.0
        %445 = vmatprep.subr.mxu0 0.0
        %446 = vmatpush1.msra.mxu0 0.0
        %447 = vmatprep.subr.mxu0 0.0
        %448 = vmatpush1.msra.mxu0 0.0
        %449 = vmatprep.subr.mxu0 0.0
        %450 = vmatpush1.msra.mxu0 0.0
        %451 = vmatprep.subr.mxu0 0.0
        %452 = vmatpush1.msra.mxu0 0.0
        %453 = vmatprep.subr.mxu0 0.0
        %454 = vmatpush1.msra.mxu0 0.0
        %455 = vmatprep.subr.mxu0 0.0
        %456 = vmatpush1.msra.mxu0 0.0
        %457 = vmatprep.subr.mxu0 0.0
        %458 = vmatpush1.msra.mxu0 0.0
        %459 = vmatprep.subr.mxu0 0.0
        %460 = vmatpush1.msra.mxu0 0.0
        %461 = vmatprep.subr.mxu0 0.0
        %462 = vmatpush1.msra.mxu0 0.0
        %463 = vmatprep.subr.mxu0 0.0
        %464 = vmatpush1.msra.mxu0 0.0
        %465 = vmatprep.subr.mxu0 0.0
        %466 = vmatpush1.msra.mxu0 0.0
        %467 = vmatprep.subr.mxu0 0.0
        %468 = vmatpush1.msra.mxu0 0.0
        %469 = vmatprep.subr.mxu0 0.0
        %470 = vmatpush1.msra.mxu0 0.0
        %471 = vmatprep.subr.mxu0 0.0
        %v472 = vand.u32 %v207, 4294901760
        %473 = vmatpush1.msra.mxu0 %v472
        %474 = vmatprep.subr.mxu0 0.0
        %v475 = vand.u32 %v197, 4294901760
        %476 = vmatpush1.msra.mxu0 %v475
        %477 = vmatprep.subr.mxu0 0.0
        %478 = vmatpush2.msra.mxu0 0.0
        %479 = vmatprep.subr.mxu0 0.0
        %480 = vmatpush2.msra.mxu0 0.0
        %481 = vmatprep.subr.mxu0 0.0
        %482 = vmatpush2.msra.mxu0 0.0
        %483 = vmatprep.subr.mxu0 0.0
        %484 = vmatpush2.msra.mxu0 0.0
        %485 = vmatprep.subr.mxu0 0.0
        %486 = vmatpush2.msra.mxu0 0.0
        %487 = vmatprep.subr.mxu0 0.0
        %488 = vmatpush2.msra.mxu0 0.0
        %489 = vmatprep.subr.mxu0 0.0
        %490 = vmatpush2.msra.mxu0 0.0
        %491 = vmatprep.subr.mxu0 0.0
        %492 = vmatpush2.msra.mxu0 0.0
        %493 = vmatprep.subr.mxu0 0.0
        %494 = vmatpush2.msra.mxu0 0.0
        %495 = vmatprep.subr.mxu0 0.0
        %496 = vmatpush2.msra.mxu0 0.0
        %497 = vmatprep.subr.mxu0 0.0
        %498 = vmatpush2.msra.mxu0 0.0
        %499 = vmatprep.subr.mxu0 0.0
        %500 = vmatpush2.msra.mxu0 0.0
        %501 = vmatprep.subr.mxu0 0.0
        %502 = vmatpush2.msra.mxu0 0.0
        %503 = vmatprep.subr.mxu0 0.0
        %504 = vmatpush2.msra.mxu0 0.0
        %505 = vmatprep.subr.mxu0 0.0
        %506 = vmatpush2.msra.mxu0 0.0
        %507 = vmatprep.subr.mxu0 0.0
        %508 = vmatpush2.msra.mxu0 0.0
        %509 = vmatprep.mubr.f32.mxu0 0.0
        %v510 = vand.u32 %v205, 4294901760
        %v511 = vsub.f32 %v205, %v510
        %v512 = vand.u32 %v511, 4294901760
        %513 = vmatmul.mubr.f32.gmra.mxu0 %v512
        %v514 = vpop.f32.mrf.mxu0
        %v515 = vadd.f32 %v440, %v514
        %v516 = vpop.f32.mrf.mxu0
        %517 = vdwg.mxu0
        %518 = vmatprep.subr.mxu0 0.0
        %519 = vmatpush1.msra.mxu0 0.0
        %520 = vmatprep.subr.mxu0 0.0
        %521 = vmatpush1.msra.mxu0 0.0
        %522 = vmatprep.subr.mxu0 0.0
        %523 = vmatpush1.msra.mxu0 0.0
        %524 = vmatprep.subr.mxu0 0.0
        %525 = vmatpush1.msra.mxu0 0.0
        %526 = vmatprep.subr.mxu0 0.0
        %527 = vmatpush1.msra.mxu0 0.0
        %528 = vmatprep.subr.mxu0 0.0
        %529 = vmatpush1.msra.mxu0 0.0
        %530 = vmatprep.subr.mxu0 0.0
        %531 = vmatpush1.msra.mxu0 0.0
        %532 = vmatprep.subr.mxu0 0.0
        %533 = vmatpush1.msra.mxu0 0.0
        %534 = vmatprep.subr.mxu0 0.0
        %535 = vmatpush1.msra.mxu0 0.0
        %536 = vmatprep.subr.mxu0 0.0
        %537 = vmatpush1.msra.mxu0 0.0
        %538 = vmatprep.subr.mxu0 0.0
        %539 = vmatpush1.msra.mxu0 0.0
        %540 = vmatprep.subr.mxu0 0.0
        %541 = vmatpush1.msra.mxu0 0.0
        %542 = vmatprep.subr.mxu0 0.0
        %543 = vmatpush1.msra.mxu0 0.0
        %544 = vmatprep.subr.mxu0 0.0
        %545 = vmatpush1.msra.mxu0 0.0
        %546 = vmatprep.subr.mxu0 0.0
        %v547 = vand.u32 %v207, 4294901760
        %v548 = vsub.f32 %v207, %v547
        %v549 = vand.u32 %v548, 4294901760
        %550 = vmatpush1.msra.mxu0 %v549
        %551 = vmatprep.subr.mxu0 0.0
        %v552 = vand.u32 %v197, 4294901760
        %v553 = vsub.f32 %v197, %v552
        %v554 = vand.u32 %v553, 4294901760
        %555 = vmatpush1.msra.mxu0 %v554
        %556 = vmatprep.subr.mxu0 0.0
        %557 = vmatpush2.msra.mxu0 0.0
        %558 = vmatprep.subr.mxu0 0.0
        %559 = vmatpush2.msra.mxu0 0.0
        %560 = vmatprep.subr.mxu0 0.0
        %561 = vmatpush2.msra.mxu0 0.0
        %562 = vmatprep.subr.mxu0 0.0
        %563 = vmatpush2.msra.mxu0 0.0
        %564 = vmatprep.subr.mxu0 0.0
        %565 = vmatpush2.msra.mxu0 0.0
        %566 = vmatprep.subr.mxu0 0.0
        %567 = vmatpush2.msra.mxu0 0.0
        %568 = vmatprep.subr.mxu0 0.0
        %569 = vmatpush2.msra.mxu0 0.0
        %570 = vmatprep.subr.mxu0 0.0
        %571 = vmatpush2.msra.mxu0 0.0
        %572 = vmatprep.subr.mxu0 0.0
        %573 = vmatpush2.msra.mxu0 0.0
        %574 = vmatprep.subr.mxu0 0.0
        %575 = vmatpush2.msra.mxu0 0.0
        %576 = vmatprep.subr.mxu0 0.0
        %577 = vmatpush2.msra.mxu0 0.0
        %578 = vmatprep.subr.mxu0 0.0
        %579 = vmatpush2.msra.mxu0 0.0
        %580 = vmatprep.subr.mxu0 0.0
        %581 = vmatpush2.msra.mxu0 0.0
        %582 = vmatprep.subr.mxu0 0.0
        %583 = vmatpush2.msra.mxu0 0.0
        %584 = vmatprep.subr.mxu0 0.0
        %585 = vmatpush2.msra.mxu0 0.0
        %586 = vmatprep.subr.mxu0 0.0
        %587 = vmatpush2.msra.mxu0 0.0
        %588 = vmatprep.mubr.f32.mxu0 0.0
        %v589 = vand.u32 %v205, 4294901760
        %590 = vmatmul.mubr.f32.gmra.mxu0 %v589
        %v591 = vpop.f32.mrf.mxu0
        %v592 = vadd.f32 %v515, %v591
        %v593 = vpop.f32.mrf.mxu0
        %594 = vdwg.mxu0
        %595 = vmatprep.subr.mxu0 0.0
        %596 = vmatpush1.msra.mxu0 0.0
        %597 = vmatprep.subr.mxu0 0.0
        %598 = vmatpush1.msra.mxu0 0.0
        %599 = vmatprep.subr.mxu0 0.0
        %600 = vmatpush1.msra.mxu0 0.0
        %601 = vmatprep.subr.mxu0 0.0
        %602 = vmatpush1.msra.mxu0 0.0
        %603 = vmatprep.subr.mxu0 0.0
        %604 = vmatpush1.msra.mxu0 0.0
        %605 = vmatprep.subr.mxu0 0.0
        %606 = vmatpush1.msra.mxu0 0.0
        %607 = vmatprep.subr.mxu0 0.0
        %608 = vmatpush1.msra.mxu0 0.0
        %609 = vmatprep.subr.mxu0 0.0
        %610 = vmatpush1.msra.mxu0 0.0
        %611 = vmatprep.subr.mxu0 0.0
        %612 = vmatpush1.msra.mxu0 0.0
        %613 = vmatprep.subr.mxu0 0.0
        %614 = vmatpush1.msra.mxu0 0.0
        %615 = vmatprep.subr.mxu0 0.0
        %616 = vmatpush1.msra.mxu0 0.0
        %617 = vmatprep.subr.mxu0 0.0
        %618 = vmatpush1.msra.mxu0 0.0
        %619 = vmatprep.subr.mxu0 0.0
        %620 = vmatpush1.msra.mxu0 0.0
        %621 = vmatprep.subr.mxu0 0.0
        %622 = vmatpush1.msra.mxu0 0.0
        %623 = vmatprep.subr.mxu0 0.0
        %v624 = vand.u32 %v207, 4294901760
        %625 = vmatpush1.msra.mxu0 %v624
        %626 = vmatprep.subr.mxu0 0.0
        %v627 = vand.u32 %v197, 4294901760
        %628 = vmatpush1.msra.mxu0 %v627
        %629 = vmatprep.subr.mxu0 0.0
        %630 = vmatpush2.msra.mxu0 0.0
        %631 = vmatprep.subr.mxu0 0.0
        %632 = vmatpush2.msra.mxu0 0.0
        %633 = vmatprep.subr.mxu0 0.0
        %634 = vmatpush2.msra.mxu0 0.0
        %635 = vmatprep.subr.mxu0 0.0
        %636 = vmatpush2.msra.mxu0 0.0
        %637 = vmatprep.subr.mxu0 0.0
        %638 = vmatpush2.msra.mxu0 0.0
        %639 = vmatprep.subr.mxu0 0.0
        %640 = vmatpush2.msra.mxu0 0.0
        %641 = vmatprep.subr.mxu0 0.0
        %642 = vmatpush2.msra.mxu0 0.0
        %643 = vmatprep.subr.mxu0 0.0
        %644 = vmatpush2.msra.mxu0 0.0
        %645 = vmatprep.subr.mxu0 0.0
        %646 = vmatpush2.msra.mxu0 0.0
        %647 = vmatprep.subr.mxu0 0.0
        %648 = vmatpush2.msra.mxu0 0.0
        %649 = vmatprep.subr.mxu0 0.0
        %650 = vmatpush2.msra.mxu0 0.0
        %651 = vmatprep.subr.mxu0 0.0
        %652 = vmatpush2.msra.mxu0 0.0
        %653 = vmatprep.subr.mxu0 0.0
        %654 = vmatpush2.msra.mxu0 0.0
        %655 = vmatprep.subr.mxu0 0.0
        %656 = vmatpush2.msra.mxu0 0.0
        %657 = vmatprep.subr.mxu0 0.0
        %658 = vmatpush2.msra.mxu0 0.0
        %659 = vmatprep.subr.mxu0 0.0
        %660 = vmatpush2.msra.mxu0 0.0
        %661 = vmatprep.mubr.f32.mxu0 0.0
        %v662 = vand.u32 %v205, 4294901760
        %663 = vmatmul.mubr.f32.gmra.mxu0 %v662
        %v664 = vpop.f32.mrf.mxu0
        %v665 = vadd.f32 %v592, %v664
        %v666 = vpop.f32.mrf.mxu0
        %667 = vdwg.mxu0
        %vm668 = vcmask 64512
        %669 = vst.msk [vmem:[%s185] sm:$0xff] %vm668, %v665
        %s670 = sand.u32 %s96, 1
        %s671 = scalar_lea.sflag [#allocation4], %s670
        %s672 = sand.u32 %s96, 1
        %s673 = smul.addr %s672, 8
        %s674 = scalar_lea.vmem [#allocation5], %s673
        // Predicated region
        $region37: #{tpu_custom_call.1} parent=31 // pred_check
          %p675 = pneg %p106
        $region38: #{tpu_custom_call.1} parent=31 // pred_check_branch
          %677 = sbr.rel (%p675) target = $region40
        $region39: #{tpu_custom_call.1} parent=31 // pred_region
          %s679 = ssub.s32 128, 128
          %680 = vsyncadd %s671, %s679
          %s681 = smul.addr %s20, 128
          %s682 = scalar_lea.hbm %s3, %s681
          %s684 = sshll.u32 %s674, 4
          %s685 = int_to_ptr.vmem [resolvable:$true] %s684
          %687 = dma.vmem_to_hbm [thread:$0]  %s685, 128, %s682, %s671
        $region40: #{tpu_custom_call.1} parent=31 // pred_fallthru
          _
      $region32: #{tpu_custom_call.1} parent=5 // pred_fallthru
        _
      %p688 = scmp.le.s32.totalorder 2, %s15
      // Predicated region
      $region41: #{tpu_custom_call.1} parent=5 // pred_check
        %p689 = pneg %p688
      $region42: #{tpu_custom_call.1} parent=5 // pred_check_branch
        %691 = sbr.rel (%p689) target = $region44
      $region43: #{tpu_custom_call.1} parent=5 // pred_region
        %s692 = ssub.s32 %s15, 2
        // Predicated region
        $region45: #{tpu_custom_call.1} parent=43 // pred_check
          %p693 = pneg %p112
        $region46: #{tpu_custom_call.1} parent=43 // pred_check_branch
          %695 = sbr.rel (%p693) target = $region48
        $region47: #{tpu_custom_call.1} parent=43 // pred_region
          %s696 = sand.u32 %s97, 1
          %s697 = scalar_lea.sflag [#allocation4], %s696
          %s698 = sand.u32 %s97, 1
          %s699 = smul.addr %s698, 8
          %s700 = scalar_lea.vmem [#allocation5], %s699
          %701 = dma.done %s697, 128
        $region48: #{tpu_custom_call.1} parent=43 // pred_fallthru
          _
      $region44: #{tpu_custom_call.1} parent=5 // pred_fallthru
        _
    $region6: #{tpu_custom_call.1} parent=1 // loop_footer
      %s19 = sadd.s32 1, %s15
    $region7: #{tpu_custom_call.1} parent=1 // loop_footer_branch
      %14 = sbr.rel target = $region3
    $region8: #{tpu_custom_call.1} parent=1 // loop_exit
      _
    %702 = vsyncpa [#allocation3], 1
    %s703 = scalar_lea.sflag [#allocation3], 1
    %704 = vsyncpa %s703, 1
    %705 = vsyncpa [#allocation4], 1
    %s706 = scalar_lea.sflag [#allocation4], 1
    %707 = vsyncpa %s706, 1

</llo_original>
